<compile_context>
chip_gen: v5e
topology: v5e:2x2
jax: 0.10.0
libtpu: 0.0.40
codegen_flags: <defaults>
</compile_context>

<pallas_src>
import functools

import numpy as np
import jax
import jax.numpy as jnp
from jax import lax
from jax.experimental import pallas as pl
from jax.experimental.pallas import tpu as pltpu


def _pick_tile(p, cap=2048):
    """Largest multiple-of-128 tile <= cap that divides p (fallback: p itself)."""
    for t in (2048, 1024, 512, 256, 128):
        if t <= cap and p % t == 0:
            return t
    return p


# ---------------------------------------------------------------------------
# Pallas kernel 1: lane-dense GEMM + bias (+ optional ReLU) for all 3x3 convs
#   (C_out, 9C) @ (9C, spatial_tile) -> spatial on the 128-lane axis
# ---------------------------------------------------------------------------
def conv_gemm_kernel(x_ref, w_ref, b_ref, o_ref, *, relu):
    y = jnp.dot(w_ref[...].astype(jnp.bfloat16),
                x_ref[...].astype(jnp.bfloat16),
                preferred_element_type=jnp.float32) + b_ref[...]
    if relu:
        y = jnp.maximum(y, 0.0)
    o_ref[...] = y


def conv3x3(x, w, b, relu=False):
    """PyTorch Conv2d(kernel=3, padding=1, stride=1). x:(N,C,H,W) w:(Co,Ci,3,3) b:(Co,)."""
    N, C, H, W = x.shape
    C_out = w.shape[0]
    P = N * H * W
    T = _pick_tile(P)

    # im2col (glue, pure data movement), spatial-major so N*H*W lands on lanes.
    # Row order is (tap-major, channel-minor): row = k*C + c.
    xp = jnp.pad(x, ((0, 0), (0, 0), (1, 1), (1, 1)))
    taps = [xp[:, :, di:di + H, dj:dj + W] for di in range(3) for dj in range(3)]
    patches = (jnp.stack(taps, axis=0)            # (9, N, C, H, W)
               .transpose(0, 2, 1, 3, 4)          # (9, C, N, H, W)
               .reshape(9 * C, P))
    w_mat = w.transpose(0, 2, 3, 1).reshape(C_out, 9 * C)   # glue (param setup)

    out = pl.pallas_call(
        functools.partial(conv_gemm_kernel, relu=relu),
        out_shape=jax.ShapeDtypeStruct((C_out, P), jnp.float32),
        grid=(P // T,),
        in_specs=[
            pl.BlockSpec((9 * C, T), lambda j: (0, j)),      # spatial tile streamed
            pl.BlockSpec((C_out, 9 * C), lambda j: (0, 0)),  # weights resident
            pl.BlockSpec((C_out, 1), lambda j: (0, 0)),      # bias resident
        ],
        out_specs=pl.BlockSpec((C_out, T), lambda j: (0, j)),
        compiler_params=pltpu.CompilerParams(dimension_semantics=("parallel",)),
    )(patches, w_mat, b.reshape(C_out, 1))
    return out.reshape(C_out, N, H, W).transpose(1, 0, 2, 3)


# ---------------------------------------------------------------------------
# Pallas kernel 2: deformable conv2d (torchvision DeformConv2d semantics,
# kernel=3, padding=1, stride=1, dilation=1, 1 offset group, no mask)
# ---------------------------------------------------------------------------
def deform_conv_kernel(x_ref, off_ref, w_ref, b_ref, o_ref, *, H, W, T):
    """x:(C_in,H*W) off:(18,T) w:(C_out,9*C_in) b:(C_out,1) -> o:(C_out,T)."""
    x = x_ref[...].astype(jnp.bfloat16)                         # (C_in, HW)

    # Output-pixel coordinates for this tile (computed once, reused by all 9 taps).
    t0 = pl.program_id(1) * T
    p_lin = t0 + lax.broadcasted_iota(jnp.int32, (1, T), 1)     # (1, T)
    base_h = (p_lin // W).astype(jnp.float32)
    base_w = (p_lin % W).astype(jnp.float32)
    iota_h = lax.broadcasted_iota(jnp.int32, (H, 1), 0)
    iota_w = lax.broadcasted_iota(jnp.int32, (W, 1), 0)

    def axis_onehot(i0, frac, iota, size):
        # Per-axis bilinear weights scattered onto grid rows: (size, T).
        # Corner i0 gets (1-frac), corner i0+1 gets frac; out-of-range corners get
        # zero weight (zero-padding semantics, matches torchvision bilinear).
        w0 = jnp.where((i0 >= 0.0) & (i0 <= size - 1.0), 1.0 - frac, 0.0)
        w1 = jnp.where((i0 + 1.0 >= 0.0) & (i0 + 1.0 <= size - 1.0), frac, 0.0)
        idx0 = jnp.clip(i0, 0.0, size - 1.0).astype(jnp.int32)
        idx1 = jnp.clip(i0 + 1.0, 0.0, size - 1.0).astype(jnp.int32)
        return (jnp.where(iota == idx0, w0, 0.0) +
                jnp.where(iota == idx1, w1, 0.0))

    cols = []
    for k in range(9):                                          # static unroll: 9 taps
        ki, kj = k // 3, k % 3
        ph = base_h + (ki - 1) + off_ref[2 * k:2 * k + 1, :]    # (1, T) y-coordinate
        pw = base_w + (kj - 1) + off_ref[2 * k + 1:2 * k + 2, :]  # (1, T) x-coordinate
        h0 = jnp.floor(ph)
        w0 = jnp.floor(pw)
        s_h = axis_onehot(h0, ph - h0, iota_h, H)               # (H, T)
        s_w = axis_onehot(w0, pw - w0, iota_w, W)               # (W, T)
        # Factored bilinear sampling matrix S[h*W + w, p] = s_h[h, p] * s_w[w, p].
        S = (s_h[:, None, :] * s_w[None, :, :]).reshape(H * W, T)
        cols.append(jnp.dot(x, S.astype(jnp.bfloat16),
                            preferred_element_type=jnp.float32))  # (C_in, T)

    # Single K=9*C_in GEMM instead of 9 tiny per-tap matmuls.
    col = jnp.concatenate(cols, axis=0)                         # (9*C_in, T)
    o_ref[...] = jnp.dot(w_ref[...].astype(jnp.bfloat16),
                         col.astype(jnp.bfloat16),
                         preferred_element_type=jnp.float32) + b_ref[...]


def deform_conv2d(x, offset, w, b):
    """x:(N,Ci,H,W) offset:(N,18,H,W) w:(Co,Ci,3,3) b:(Co,) -> (N,Co,H,W)."""
    N, C_in, H, W = x.shape
    C_out = w.shape[0]
    HW = H * W
    T = _pick_tile(HW)
    x_flat = x.reshape(N, C_in, HW)                             # glue
    off_flat = offset.reshape(N, 18, HW)                        # glue
    w_mat = w.transpose(0, 2, 3, 1).reshape(C_out, 9 * C_in)    # glue (param setup)

    out = pl.pallas_call(
        functools.partial(deform_conv_kernel, H=H, W=W, T=T),
        out_shape=jax.ShapeDtypeStruct((N, C_out, HW), jnp.float32),
        grid=(N, HW // T),
        in_specs=[
            pl.BlockSpec((None, C_in, HW), lambda n, t: (n, 0, 0)),  # full spatial x
            pl.BlockSpec((None, 18, T), lambda n, t: (n, 0, t)),     # offset tile
            pl.BlockSpec((C_out, 9 * C_in), lambda n, t: (0, 0)),    # weights resident
            pl.BlockSpec((C_out, 1), lambda n, t: (0, 0)),           # bias resident
        ],
        out_specs=pl.BlockSpec((None, C_out, T), lambda n, t: (n, 0, t)),
        compiler_params=pltpu.CompilerParams(
            dimension_semantics=("parallel", "parallel")),           # 2 TCs on v7x
    )(x_flat, off_flat, w_mat, b.reshape(C_out, 1))
    return out.reshape(N, C_out, H, W)


# ---------------------------------------------------------------------------
# DeformableConvBlock forward
# ---------------------------------------------------------------------------
def dynamic_offset_estimator(x, p):
    # TODO(synk): the original Dynamic_offset_estimator source was not provided;
    # using a channel-preserving residual block (conv3x3+ReLU, conv3x3, +skip)
    # with matching in/out channel count so the downstream offset_conv shapes hold.
    h = conv3x3(x, p["doe_w1"], p["doe_b1"], relu=True)
    h = conv3x3(h, p["doe_w2"], p["doe_b2"], relu=False)
    return x + h


def deformable_conv_block(lr_features, hr_features, p):
    x = jnp.concatenate([lr_features, hr_features], axis=1)          # torch.cat dim=1
    est = dynamic_offset_estimator(x, p)
    offset = conv3x3(est, p["off_w"], p["off_b"], relu=False)        # (N, 18, H, W)
    return deform_conv2d(lr_features, offset, p["dcn_w"], p["dcn_b"])


def init_params(key, c_in, mode="concat"):
    c2 = c_in * 2 if mode == "concat" else c_in + 2
    ks = jax.random.split(key, 8)
    s = 0.1
    return dict(
        doe_w1=jax.random.normal(ks[0], (c2, c2, 3, 3), jnp.float32) * s,
        doe_b1=jax.random.normal(ks[1], (c2,), jnp.float32) * s,
        doe_w2=jax.random.normal(ks[2], (c2, c2, 3, 3), jnp.float32) * s,
        doe_b2=jax.random.normal(ks[3], (c2,), jnp.float32) * s,
        off_w=jax.random.normal(ks[4], (18, c2, 3, 3), jnp.float32) * s,
        off_b=jax.random.normal(ks[5], (18,), jnp.float32) * s,
        dcn_w=jax.random.normal(ks[6], (c_in, c_in, 3, 3), jnp.float32) * s,
        dcn_b=jax.random.normal(ks[7], (c_in,), jnp.float32) * s,
    )


# ---------------------------------------------------------------------------
# Pure-JAX f32 reference (numerical verification of the Pallas kernels)
# ---------------------------------------------------------------------------
def conv3x3_ref(x, w, b, relu=False):
    y = lax.conv_general_dilated(x, w, (1, 1), ((1, 1), (1, 1)),
                                 dimension_numbers=("NCHW", "OIHW", "NCHW"),
                                 precision=lax.Precision.HIGHEST)
    y = y + b[None, :, None, None]
    return jnp.maximum(y, 0.0) if relu else y


def deform_conv2d_ref(x, offset, w, b):
    N, C_in, H, W = x.shape
    C_out = w.shape[0]
    hh = jnp.arange(H, dtype=jnp.float32)[:, None]
    ww = jnp.arange(W, dtype=jnp.float32)[None, :]
    cols = []
    for k in range(9):
        ki, kj = k // 3, k % 3
        ph = hh + (ki - 1) + offset[:, 2 * k]
        pw = ww + (kj - 1) + offset[:, 2 * k + 1]
        h0 = jnp.floor(ph)
        w0 = jnp.floor(pw)
        lh, lw = ph - h0, pw - w0
        samp = jnp.zeros((N, C_in, H, W), jnp.float32)
        for dh, dw, wt in ((0, 0, (1 - lh) * (1 - lw)), (0, 1, (1 - lh) * lw),
                           (1, 0, lh * (1 - lw)), (1, 1, lh * lw)):
            hi, wi = h0 + dh, w0 + dw
            valid = (hi >= 0) & (hi <= H - 1) & (wi >= 0) & (wi <= W - 1)
            hic = jnp.clip(hi, 0, H - 1).astype(jnp.int32)
            wic = jnp.clip(wi, 0, W - 1).astype(jnp.int32)
            gathered = jax.vmap(lambda xn, hn, wn: xn[:, hn, wn])(x, hic, wic)
            samp = samp + jnp.where(valid, wt, 0.0)[:, None] * gathered
        cols.append(samp)
    col = jnp.stack(cols, axis=1)                              # (N, 9, C_in, H, W)
    wk = w.transpose(2, 3, 0, 1).reshape(9, C_out, C_in)
    out = jnp.einsum("koc,nkchw->nohw", wk, col,
                     precision=lax.Precision.HIGHEST)
    return out + b[None, :, None, None]


def deformable_conv_block_ref(lr, hr, p):
    x = jnp.concatenate([lr, hr], axis=1)
    h = conv3x3_ref(x, p["doe_w1"], p["doe_b1"], relu=True)
    h = conv3x3_ref(h, p["doe_w2"], p["doe_b2"], relu=False)
    est = x + h
    offset = conv3x3_ref(est, p["off_w"], p["off_b"], relu=False)
    return deform_conv2d_ref(lr, offset, p["dcn_w"], p["dcn_b"])


# ---------------------------------------------------------------------------
if __name__ == "__main__":
    N, C, H, W = 2, 4, 16, 16
    key = jax.random.PRNGKey(0)
    k_lr, k_hr, k_p = jax.random.split(key, 3)

    lr_features = jax.random.normal(k_lr, (N, C, H, W), jnp.float32)
    hr_features = jax.random.normal(k_hr, (N, C, H, W), jnp.float32)
    params = init_params(k_p, C, mode="concat")

    out = deformable_conv_block(lr_features, hr_features, params)
    out = jax.block_until_ready(out)

    ref = jax.block_until_ready(deformable_conv_block_ref(lr_features, hr_features, params))
    # Kernels run single-pass bf16 MXU matmuls (f32 accumulate); the reference is
    # full-f32 HIGHEST, and bf16 offset errors are amplified by the bilinear
    # sampling gradient, so the tolerance is looser than pure-f32 round-off.
    np.testing.assert_allclose(np.asarray(out), np.asarray(ref), rtol=2e-2, atol=5e-2)

    assert out.shape == (N, C, H, W) and out.dtype == jnp.float32
    print("KERNEL_OK")
</pallas_src>

<mosaic_0001>
module attributes {stable_mosaic.version = 11 : i64} {
  func.func @conv_gemm_kernel(%arg0: i32, %arg1: memref<72x512xf32, #tpu.memory_space<vmem>>, %arg2: memref<8x72xf32, #tpu.memory_space<vmem>>, %arg3: memref<8x1xf32, #tpu.memory_space<vmem>>, %arg4: memref<8x512xf32, #tpu.memory_space<vmem>>) attributes {dimension_semantics = [#tpu.dimension_semantics<parallel>], iteration_bounds = array<i64: 1>, scalar_prefetch = 0 : i64, scratch_operands = 0 : i64, tpu.core_type = #tpu.core_type<tc>, window_params = [{transform_indices = @transform_0, window_bounds = array<i64: 72, 512>}, {pipeline_mode = #tpu.pipeline_mode<synchronous>, transform_indices = @transform_1, window_bounds = array<i64: 8, 72>}, {pipeline_mode = #tpu.pipeline_mode<synchronous>, transform_indices = @transform_2, window_bounds = array<i64: 8, 1>}, {transform_indices = @transform_3, window_bounds = array<i64: 8, 512>}]} {
    %c0 = arith.constant 0 : index
    %c0_0 = arith.constant 0 : index
    %0 = vector.load %arg2[%c0, %c0_0] : memref<8x72xf32, #tpu.memory_space<vmem>>, vector<8x72xf32>
    %1 = arith.truncf %0 : vector<8x72xf32> to vector<8x72xbf16>
    %c0_1 = arith.constant 0 : index
    %c0_2 = arith.constant 0 : index
    %2 = vector.load %arg1[%c0_1, %c0_2] : memref<72x512xf32, #tpu.memory_space<vmem>>, vector<72x512xf32>
    %3 = arith.truncf %2 : vector<72x512xf32> to vector<72x512xbf16>
    %cst = arith.constant dense<0.000000e+00> : vector<8x512xf32>
    %4 = tpu.matmul %1, %3, %cst {dimension_numbers = #tpu.dot_dimension_numbers<[1], [0], [0], [1], [0, 0, 1, 1], [], []>} : vector<8x72xbf16>, vector<72x512xbf16>, vector<8x512xf32> -> vector<8x512xf32>
    %c0_3 = arith.constant 0 : index
    %c0_4 = arith.constant 0 : index
    %5 = vector.load %arg3[%c0_3, %c0_4] : memref<8x1xf32, #tpu.memory_space<vmem>>, vector<8x1xf32>
    %6 = vector.broadcast %5 : vector<8x1xf32> to vector<8x512xf32>
    %7 = arith.addf %4, %6 : vector<8x512xf32>
    %cst_5 = arith.constant 0.000000e+00 : f32
    %8 = vector.broadcast %cst_5 : f32 to vector<8x512xf32>
    %9 = arith.maximumf %7, %8 : vector<8x512xf32>
    %c0_6 = arith.constant 0 : index
    %c0_7 = arith.constant 0 : index
    %10 = vector.load %arg4[%c0_6, %c0_7] : memref<8x512xf32, #tpu.memory_space<vmem>>, vector<8x512xf32>
    tpu.vector_store %arg4[%c0_6, %c0_7], %9 {strides = array<i32>} : memref<8x512xf32, #tpu.memory_space<vmem>>, vector<8x512xf32>,
    return
  }
  func.func @transform_0(%arg0: i32) -> (i32, i32) {
    %c0_i32 = arith.constant 0 : i32
    %c0_i32_0 = arith.constant 0 : i32
    return %c0_i32, %arg0 : i32, i32
  }
  func.func @transform_1(%arg0: i32) -> (i32, i32) {
    %c0_i32 = arith.constant 0 : i32
    %c0_i32_0 = arith.constant 0 : i32
    %c0_i32_1 = arith.constant 0 : i32
    return %c0_i32, %c0_i32_0 : i32, i32
  }
  func.func @transform_2(%arg0: i32) -> (i32, i32) {
    %c0_i32 = arith.constant 0 : i32
    %c0_i32_0 = arith.constant 0 : i32
    %c0_i32_1 = arith.constant 0 : i32
    return %c0_i32, %c0_i32_0 : i32, i32
  }
  func.func @transform_3(%arg0: i32) -> (i32, i32) {
    %c0_i32 = arith.constant 0 : i32
    %c0_i32_0 = arith.constant 0 : i32
    return %c0_i32, %arg0 : i32, i32
  }
}

</mosaic_0001>

<llo_original>
// kernel: tpu_custom_call.1
$region0: #{tpu_custom_call.1}
  #allocation0 [shape = 'u32[]', space=smem, size = 0x4, offset = 0x4, fixed_abs, tag = 'smem constant byte address 0x4 - core index']
  #allocation1 [shape = 'u32[72,128]{1,0:T(1,128)}', space=vmem, size = 0x9000, scoped, tag = 'internal scratch']
  %s0 = inlined_call_operand.hbm [shape: f32[72,512], index: 0, kind: input, shape index: {}]
  %s1 = inlined_call_operand.vmem [shape: f32[8,72], index: 1, kind: input, shape index: {}]
  %s2 = inlined_call_operand.vmem [shape: f32[8,1], index: 2, kind: input, shape index: {}]
  %s3 = inlined_call_operand.hbm [shape: f32[8,512], index: 3, kind: output, shape index: {}]
  %s4 = sld [smem:[#allocation0]]
  $region26: #{tpu_custom_call.1} parent=0
    _
  %s6 = ssub.s32 1, %s4
  %s7 = scalar_select 0, %s6, %s4
  $region1: #{tpu_custom_call.1} parent=0
    #allocation2 [shape = 'u8[147456]{0}', space=vmem, size = 0x24000, scoped, tag = 'input window, operand 0, single buffered']
    #allocation3 [shape = 's32[1]{0}', space=sflag, size = 0x4, scoped, tag = 'scoped memory for tpu_custom_call.1']
    #allocation4 [shape = 's32[1]{0}', space=sflag, size = 0x4, scoped, tag = 'scoped memory for tpu_custom_call.1']
    #allocation5 [shape = 'u8[16384]{0}', space=vmem, size = 0x4000, scoped, tag = 'output window, operand 0, single buffered']
    %8 = vsyncpa [#allocation3], 0
    %9 = vsyncpa [#allocation4], 0
    // Predicated region
    $region2: #{tpu_custom_call.1} parent=1 // pred_check
      _
    $region3: #{tpu_custom_call.1} parent=1 // pred_check_branch
      %11 = sbr.rel (0) target = $region5
    $region4: #{tpu_custom_call.1} parent=1 // pred_region
      %13 = vsyncadd [#allocation3], 0
      %s14 = sshll.u32 %s0, 4
      %s15 = int_to_ptr.hbm [resolvable:$true] %s14
      %s16 = sshll.u32 [#allocation2], 4
      %s17 = int_to_ptr.vmem [resolvable:$true] %s16
      %22 = dma.hbm_to_vmem [thread:$0]  %s15, 4608, %s17, [#allocation3], 512, 512, 32
    $region5: #{tpu_custom_call.1} parent=1 // pred_fallthru
      _
    // Predicated region
    $region6: #{tpu_custom_call.1} parent=1 // pred_check
      _
    $region7: #{tpu_custom_call.1} parent=1 // pred_check_branch
      %24 = sbr.rel (0) target = $region9
    $region8: #{tpu_custom_call.1} parent=1 // pred_region
      _
    $region9: #{tpu_custom_call.1} parent=1 // pred_fallthru
      _
    // Predicated region
    $region10: #{tpu_custom_call.1} parent=1 // pred_check
      _
    $region11: #{tpu_custom_call.1} parent=1 // pred_check_branch
      %26 = sbr.rel (0) target = $region13
    $region12: #{tpu_custom_call.1} parent=1 // pred_region
      _
    $region13: #{tpu_custom_call.1} parent=1 // pred_fallthru
      _
    // Predicated region
    $region14: #{tpu_custom_call.1} parent=1 // pred_check
      _
    $region15: #{tpu_custom_call.1} parent=1 // pred_check_branch
      %28 = sbr.rel (0) target = $region17
    $region16: #{tpu_custom_call.1} parent=1 // pred_region
      %30 = dma.done [#allocation3], 4608
    $region17: #{tpu_custom_call.1} parent=1 // pred_fallthru
      _
    %v32 = vld [vmem:[%s1] sm:$0xff]
    %v33 = vpack.c.bf16 %v32, %v32
    %v34 = vld [vmem:[#allocation2] sm:$0xff]
    %v35 = vld [vmem:[#allocation2 + $0x8] sm:$0xff]
    %v36 = vld [vmem:[#allocation2 + $0x10] sm:$0xff]
    %v37 = vld [vmem:[#allocation2 + $0x18] sm:$0xff]
    %v38 = vld [vmem:[#allocation2 + $0x20] sm:$0xff]
    %v39 = vld [vmem:[#allocation2 + $0x28] sm:$0xff]
    %v40 = vld [vmem:[#allocation2 + $0x30] sm:$0xff]
    %v41 = vld [vmem:[#allocation2 + $0x38] sm:$0xff]
    %v42 = vld [vmem:[#allocation2 + $0x40] sm:$0xff]
    %v43 = vld [vmem:[#allocation2 + $0x48] sm:$0xff]
    %v44 = vld [vmem:[#allocation2 + $0x50] sm:$0xff]
    %v45 = vld [vmem:[#allocation2 + $0x58] sm:$0xff]
    %v46 = vld [vmem:[#allocation2 + $0x60] sm:$0xff]
    %v47 = vld [vmem:[#allocation2 + $0x68] sm:$0xff]
    %v48 = vld [vmem:[#allocation2 + $0x70] sm:$0xff]
    %v49 = vld [vmem:[#allocation2 + $0x78] sm:$0xff]
    %v50 = vld [vmem:[#allocation2 + $0x80] sm:$0xff]
    %v51 = vld [vmem:[#allocation2 + $0x88] sm:$0xff]
    %v52 = vld [vmem:[#allocation2 + $0x90] sm:$0xff]
    %v53 = vld [vmem:[#allocation2 + $0x98] sm:$0xff]
    %v54 = vld [vmem:[#allocation2 + $0xa0] sm:$0xff]
    %v55 = vld [vmem:[#allocation2 + $0xa8] sm:$0xff]
    %v56 = vld [vmem:[#allocation2 + $0xb0] sm:$0xff]
    %v57 = vld [vmem:[#allocation2 + $0xb8] sm:$0xff]
    %v58 = vld [vmem:[#allocation2 + $0xc0] sm:$0xff]
    %v59 = vld [vmem:[#allocation2 + $0xc8] sm:$0xff]
    %v60 = vld [vmem:[#allocation2 + $0xd0] sm:$0xff]
    %v61 = vld [vmem:[#allocation2 + $0xd8] sm:$0xff]
    %v62 = vld [vmem:[#allocation2 + $0xe0] sm:$0xff]
    %v63 = vld [vmem:[#allocation2 + $0xe8] sm:$0xff]
    %v64 = vld [vmem:[#allocation2 + $0xf0] sm:$0xff]
    %v65 = vld [vmem:[#allocation2 + $0xf8] sm:$0xff]
    %v66 = vld [vmem:[#allocation2 + $0x100] sm:$0xff]
    %v67 = vld [vmem:[#allocation2 + $0x108] sm:$0xff]
    %v68 = vld [vmem:[#allocation2 + $0x110] sm:$0xff]
    %v69 = vld [vmem:[#allocation2 + $0x118] sm:$0xff]
    %v70 = vpack.c.bf16 %v38, %v34
    %v71 = vpack.c.bf16 %v39, %v35
    %v72 = vpack.c.bf16 %v40, %v36
    %v73 = vpack.c.bf16 %v41, %v37
    %v74 = vpack.c.bf16 %v46, %v42
    %v75 = vpack.c.bf16 %v47, %v43
    %v76 = vpack.c.bf16 %v48, %v44
    %v77 = vpack.c.bf16 %v49, %v45
    %v78 = vpack.c.bf16 %v54, %v50
    %v79 = vpack.c.bf16 %v55, %v51
    %v80 = vpack.c.bf16 %v56, %v52
    %v81 = vpack.c.bf16 %v57, %v53
    %v82 = vpack.c.bf16 %v62, %v58
    %v83 = vpack.c.bf16 %v63, %v59
    %v84 = vpack.c.bf16 %v64, %v60
    %v85 = vpack.c.bf16 %v65, %v61
    %v86 = vpack.c.bf16 %v66, %v66
    %v87 = vpack.c.bf16 %v67, %v67
    %v88 = vpack.c.bf16 %v68, %v68
    %v89 = vpack.c.bf16 %v69, %v69
    %v90 = vld [vmem:[%s2] sm:$0xff]
    %92 = vset.pattern.permute.xlu0 0
    %93 = vperm.xlu0 %92, %v90
    %v94 = vpop.permute.xlu0 %93
    %vm96 = vcmask 588800
    %v98 = vsel %vm96, %v33, 0
    %vm100 = vcmask 1043456
    %v102 = vsel %vm100, %v86, 0
    %v105 = vsel %vm100, %v87, 0
    %v108 = vsel %vm100, %v88, 0
    %v111 = vsel %vm100, %v89, 0
    %113 = vmatpush.bf16.msra.mxu0 0
    %114 = vmatpush.bf16.msra.mxu0 0
    %115 = vmatpush.bf16.msra.mxu0 0
    %116 = vmatpush.bf16.msra.mxu0 %v102
    %117 = vmatpush.bf16.msra.mxu0 %v82
    %118 = vmatpush.bf16.msra.mxu0 %v78
    %119 = vmatpush.bf16.msra.mxu0 %v74
    %120 = vmatpush.bf16.msra.mxu0 %v70
    %121 = vmatmul.bf16.gmra.mxu0 %v98
    %v122 = vpop.f32.mrf.mxu0
    %v123 = vadd.f32 %v94, %v122
    %v124 = vpop.f32.mrf.mxu0
    %125 = vdwg.mxu0
    %126 = vmatpush.bf16.msra.mxu0 0
    %127 = vmatpush.bf16.msra.mxu0 0
    %128 = vmatpush.bf16.msra.mxu0 0
    %129 = vmatpush.bf16.msra.mxu0 %v105
    %130 = vmatpush.bf16.msra.mxu0 %v83
    %131 = vmatpush.bf16.msra.mxu0 %v79
    %132 = vmatpush.bf16.msra.mxu0 %v75
    %133 = vmatpush.bf16.msra.mxu0 %v71
    %134 = vmatmul.bf16.gmra.mxu0 %v98
    %v135 = vpop.f32.mrf.mxu0
    %v136 = vadd.f32 %v94, %v135
    %v137 = vpop.f32.mrf.mxu0
    %138 = vdwg.mxu0
    %139 = vmatpush.bf16.msra.mxu0 0
    %140 = vmatpush.bf16.msra.mxu0 0
    %141 = vmatpush.bf16.msra.mxu0 0
    %142 = vmatpush.bf16.msra.mxu0 %v108
    %143 = vmatpush.bf16.msra.mxu0 %v84
    %144 = vmatpush.bf16.msra.mxu0 %v80
    %145 = vmatpush.bf16.msra.mxu0 %v76
    %146 = vmatpush.bf16.msra.mxu0 %v72
    %147 = vmatmul.bf16.gmra.mxu0 %v98
    %v148 = vpop.f32.mrf.mxu0
    %v149 = vadd.f32 %v94, %v148
    %v150 = vpop.f32.mrf.mxu0
    %151 = vdwg.mxu0
    %152 = vmatpush.bf16.msra.mxu0 0
    %153 = vmatpush.bf16.msra.mxu0 0
    %154 = vmatpush.bf16.msra.mxu0 0
    %155 = vmatpush.bf16.msra.mxu0 %v111
    %156 = vmatpush.bf16.msra.mxu0 %v85
    %157 = vmatpush.bf16.msra.mxu0 %v81
    %158 = vmatpush.bf16.msra.mxu0 %v77
    %159 = vmatpush.bf16.msra.mxu0 %v73
    %160 = vmatmul.bf16.gmra.mxu0 %v98
    %v161 = vpop.f32.mrf.mxu0
    %v162 = vadd.f32 %v94, %v161
    %v163 = vpop.f32.mrf.mxu0
    %164 = vdwg.mxu0
    %v165 = vmax.f32 %v123, 0.0
    %v166 = vmax.f32 %v136, 0.0
    %v167 = vmax.f32 %v149, 0.0
    %v168 = vmax.f32 %v162, 0.0
    %169 = vst [vmem:[#allocation5] sm:$0xff] %v165
    %170 = vst [vmem:[#allocation5 + $0x8] sm:$0xff] %v166
    %171 = vst [vmem:[#allocation5 + $0x10] sm:$0xff] %v167
    %172 = vst [vmem:[#allocation5 + $0x18] sm:$0xff] %v168
    // Predicated region
    $region18: #{tpu_custom_call.1} parent=1 // pred_check
      _
    $region19: #{tpu_custom_call.1} parent=1 // pred_check_branch
      %174 = sbr.rel (0) target = $region21
    $region20: #{tpu_custom_call.1} parent=1 // pred_region
      %176 = vsyncadd [#allocation4], 0
      %s178 = sshll.u32 [#allocation5], 4
      %s179 = int_to_ptr.vmem [resolvable:$true] %s178
      %s180 = sshll.u32 %s3, 4
      %s181 = int_to_ptr.hbm [resolvable:$true] %s180
      %183 = dma.vmem_to_hbm [thread:$0]  %s179, 512, %s181, [#allocation4]
    $region21: #{tpu_custom_call.1} parent=1 // pred_fallthru
      _
    // Predicated region
    $region22: #{tpu_custom_call.1} parent=1 // pred_check
      _
    $region23: #{tpu_custom_call.1} parent=1 // pred_check_branch
      %185 = sbr.rel (0) target = $region25
    $region24: #{tpu_custom_call.1} parent=1 // pred_region
      %187 = dma.done [#allocation4], 512
    $region25: #{tpu_custom_call.1} parent=1 // pred_fallthru
      _
    %188 = vsyncpa [#allocation3], 1
    %189 = vsyncpa [#allocation4], 1

</llo_original>
